<compile_context>
chip_gen: v5e
topology: v5e:2x2
jax: 0.10.0
libtpu: 0.0.40
codegen_flags: <defaults>
</compile_context>

<pallas_src>
import functools

import jax
import jax.numpy as jnp
from jax import lax
from jax.experimental import pallas as pl
from jax.experimental.pallas import tpu as pltpu


# (in_features, out_features) per layer, PyTorch order.
LAYER_DIMS = [(2, 10), (10, 10), (10, 10), (10, 10),
              (10, 10), (10, 10), (10, 10), (10, 10), (10, 1)]
NUM_LAYERS = len(LAYER_DIMS)
PAD_F = 16   # feature dim padded to a sublane-friendly multiple of 8
IN_F = 2     # raw input features (x, t)


def _pinn_kernel(x_ref, w_ref, b_ref, out_ref):
    # x_ref:   (IN_F, TB)                  raw input block, batch on lanes
    # w_ref:   (NUM_LAYERS, PAD_F, PAD_F)  packed weights, W[l] is (out, in) padded
    # b_ref:   (NUM_LAYERS, PAD_F, 1)      packed biases (column vectors)
    # out_ref: (1, TB)                     network output (lane-dense row)
    tb = x_ref.shape[1]
    # Zero-pad the activation to PAD_F rows in VMEM (padding never touches HBM).
    h = jnp.concatenate(
        [x_ref[...], jnp.zeros((PAD_F - IN_F, tb), jnp.float32)], axis=0)
    for layer in range(NUM_LAYERS):
        w = w_ref[layer]        # (PAD_F, PAD_F), static index
        b = b_ref[layer]        # (PAD_F, 1), broadcasts along lanes
        # Feature-major: h_new = W @ h + b  (MXU gets N=TB full-width columns).
        h = jnp.dot(w, h, preferred_element_type=jnp.float32,
                    precision=lax.Precision.DEFAULT) + b
        if layer < NUM_LAYERS - 1:
            h = jnp.tanh(h)
    # Row 0 carries the network output; rows 1..15 are exact zeros.
    out_ref[...] = h[0:1, :].astype(out_ref.dtype)


def pack_params(params):
    """Pack PyTorch-shaped [W1, b1, ..., W9, b9] into two zero-padded slabs.
    Call once per parameter update; do NOT rebuild per forward call."""
    w_slab = jnp.zeros((NUM_LAYERS, PAD_F, PAD_F), jnp.float32)
    b_slab = jnp.zeros((NUM_LAYERS, PAD_F, 1), jnp.float32)
    for l, (fin, fout) in enumerate(LAYER_DIMS):
        w, b = params[2 * l], params[2 * l + 1]
        w_slab = w_slab.at[l, :fout, :fin].set(w)
        b_slab = b_slab.at[l, :fout, 0].set(b)
    return w_slab, b_slab


def _choose_block_rows(n, preferred):
    """Lane-dim tile: multiple of 128, <= preferred, and small enough that the
    grid has >=2 steps whenever N allows (so v7x's 2 TensorCores both work)."""
    preferred = max(128, -(-preferred // 128) * 128)   # round up to 128
    half = max(128, -(-(-(-n // 2)) // 128) * 128)     # round_up(ceil(n/2), 128)
    return min(preferred, half)


@functools.partial(jax.jit, static_argnames=("block_rows",))
def burgers_pinn_forward(x, w_slab, b_slab, block_rows=4096):
    """x: (N, 2) float32; w_slab/b_slab: outputs of pack_params(params)."""
    n = x.shape[0]
    br = _choose_block_rows(n, block_rows)
    num_blocks = -(-n // br)                  # ceil div, arbitrary N supported
    n_pad = num_blocks * br

    # Feature-major unpadded input: (2, n_pad), batch on lanes.
    x_t = jnp.zeros((IN_F, n_pad), jnp.float32).at[:, :n].set(
        x.astype(jnp.float32).T)

    param_bytes = 4 * (w_slab.size + b_slab.size)
    cost = pl.CostEstimate(
        flops=2 * NUM_LAYERS * PAD_F * PAD_F * n_pad,
        transcendentals=(NUM_LAYERS - 1) * PAD_F * n_pad,
        bytes_accessed=(IN_F + 1) * 4 * n_pad + param_bytes)

    out = pl.pallas_call(
        _pinn_kernel,
        out_shape=jax.ShapeDtypeStruct((1, n_pad), jnp.float32),
        grid_spec=pltpu.PrefetchScalarGridSpec(
            num_scalar_prefetch=0,
            grid=(num_blocks,),
            in_specs=[
                # Unpadded input tile (lane-dense; sublane dim == full array dim).
                pl.BlockSpec((IN_F, br), lambda i: (0, i)),
                # Full parameter slabs, replicated to every grid step.
                pl.BlockSpec((NUM_LAYERS, PAD_F, PAD_F), lambda i: (0, 0, 0)),
                pl.BlockSpec((NUM_LAYERS, PAD_F, 1), lambda i: (0, 0, 0)),
            ],
            out_specs=pl.BlockSpec((1, br), lambda i: (0, i)),
        ),
        compiler_params=pltpu.CompilerParams(
            dimension_semantics=("parallel",)),
        cost_estimate=cost,
    )(x_t, w_slab, b_slab)

    # Drop padding columns and restore (N, 1).
    return out[0, :n].reshape(n, 1)


def init_params(key):
    """Deterministic init matching PyTorch nn.Linear defaults and shapes:
    W_l: (out_features, in_features), b_l: (out_features,)."""
    params = []
    for (fin, fout) in LAYER_DIMS:
        key, kw, kb = jax.random.split(key, 3)
        bound = 1.0 / jnp.sqrt(jnp.float32(fin))
        w = jax.random.uniform(kw, (fout, fin), jnp.float32, -bound, bound)
        b = jax.random.uniform(kb, (fout,), jnp.float32, -bound, bound)
        params += [w, b]
    return params


def reference_forward(x, params):
    h = x
    for layer in range(NUM_LAYERS):
        w, b = params[2 * layer], params[2 * layer + 1]
        h = h @ w.T + b
        if layer < NUM_LAYERS - 1:
            h = jnp.tanh(h)
    return h


if __name__ == "__main__":
    key = jax.random.PRNGKey(0)
    key, kx = jax.random.split(key)
    params = init_params(key)
    w_slab, b_slab = pack_params(params)   # packed once, reused across calls

    # Batch of (x, t) collocation points; block capping keeps >=2 grid steps
    # so v7x's two TensorCores both get work.
    N = 1024
    x = jax.random.uniform(kx, (N, 2), jnp.float32, -1.0, 1.0)

    out = burgers_pinn_forward(x, w_slab, b_slab)
    out = jax.block_until_ready(out)
    ref = reference_forward(x, params)
    assert out.shape == (N, 1)
    assert jnp.allclose(out, ref, atol=1e-5, rtol=1e-5), "mismatch vs reference"

    # Non-multiple batch exercises the zero-padding path.
    key, kx2 = jax.random.split(key)
    x2 = jax.random.uniform(kx2, (200, 2), jnp.float32, -1.0, 1.0)
    out2 = jax.block_until_ready(burgers_pinn_forward(x2, w_slab, b_slab))
    ref2 = reference_forward(x2, params)
    assert out2.shape == (200, 1)
    assert jnp.allclose(out2, ref2, atol=1e-5, rtol=1e-5), "mismatch (padded batch)"

    print("KERNEL_OK")
</pallas_src>

<mosaic_0001>
module attributes {stable_mosaic.version = 11 : i64} {
  func.func @_pinn_kernel(%arg0: i32, %arg1: memref<2x512xf32, #tpu.memory_space<vmem>>, %arg2: memref<9x16x16xf32, #tpu.memory_space<vmem>>, %arg3: memref<9x16x1xf32, #tpu.memory_space<vmem>>, %arg4: memref<1x512xf32, #tpu.memory_space<vmem>>) attributes {dimension_semantics = [#tpu.dimension_semantics<parallel>], iteration_bounds = array<i64: 2>, scalar_prefetch = 0 : i64, scratch_operands = 0 : i64, tpu.core_type = #tpu.core_type<tc>, window_params = [{transform_indices = @transform_0, window_bounds = array<i64: 2, 512>}, {pipeline_mode = #tpu.pipeline_mode<synchronous>, transform_indices = @transform_1, window_bounds = array<i64: 9, 16, 16>}, {pipeline_mode = #tpu.pipeline_mode<synchronous>, transform_indices = @transform_2, window_bounds = array<i64: 9, 16, 1>}, {transform_indices = @transform_3, window_bounds = array<i64: 1, 512>}]} {
    %c0 = arith.constant 0 : index
    %c0_0 = arith.constant 0 : index
    %0 = vector.load %arg1[%c0, %c0_0] : memref<2x512xf32, #tpu.memory_space<vmem>>, vector<2x512xf32>
    %cst = arith.constant 0.000000e+00 : f32
    %1 = vector.broadcast %cst : f32 to vector<14x512xf32>
    %2 = tpu.concatenate %0, %1 in 0 : vector<2x512xf32>, vector<14x512xf32> -> vector<16x512xf32>
    %c0_1 = arith.constant 0 : index
    %c0_2 = arith.constant 0 : index
    %c0_3 = arith.constant 0 : index
    %3 = vector.load %arg2[%c0_1, %c0_2, %c0_3] : memref<9x16x16xf32, #tpu.memory_space<vmem>>, vector<1x16x16xf32>
    %4 = vector.shape_cast %3 : vector<1x16x16xf32> to vector<16x16xf32>
    %c0_4 = arith.constant 0 : index
    %c0_5 = arith.constant 0 : index
    %c0_6 = arith.constant 0 : index
    %5 = vector.load %arg3[%c0_4, %c0_5, %c0_6] : memref<9x16x1xf32, #tpu.memory_space<vmem>>, vector<1x16x1xf32>
    %6 = vector.shape_cast %5 : vector<1x16x1xf32> to vector<16x1xf32>
    %cst_7 = arith.constant dense<0.000000e+00> : vector<16x512xf32>
    %7 = tpu.matmul %4, %2, %cst_7 {dimension_numbers = #tpu.dot_dimension_numbers<[1], [0], [0], [1], [0, 0, 1, 1], [], []>} : vector<16x16xf32>, vector<16x512xf32>, vector<16x512xf32> -> vector<16x512xf32>
    %8 = vector.broadcast %6 : vector<16x1xf32> to vector<16x512xf32>
    %9 = arith.addf %7, %8 : vector<16x512xf32>
    %10 = math.tanh %9 : vector<16x512xf32>
    %c1 = arith.constant 1 : index
    %c0_8 = arith.constant 0 : index
    %c0_9 = arith.constant 0 : index
    %11 = vector.load %arg2[%c1, %c0_8, %c0_9] : memref<9x16x16xf32, #tpu.memory_space<vmem>>, vector<1x16x16xf32>
    %12 = vector.shape_cast %11 : vector<1x16x16xf32> to vector<16x16xf32>
    %c1_10 = arith.constant 1 : index
    %c0_11 = arith.constant 0 : index
    %c0_12 = arith.constant 0 : index
    %13 = vector.load %arg3[%c1_10, %c0_11, %c0_12] : memref<9x16x1xf32, #tpu.memory_space<vmem>>, vector<1x16x1xf32>
    %14 = vector.shape_cast %13 : vector<1x16x1xf32> to vector<16x1xf32>
    %cst_13 = arith.constant dense<0.000000e+00> : vector<16x512xf32>
    %15 = tpu.matmul %12, %10, %cst_13 {dimension_numbers = #tpu.dot_dimension_numbers<[1], [0], [0], [1], [0, 0, 1, 1], [], []>} : vector<16x16xf32>, vector<16x512xf32>, vector<16x512xf32> -> vector<16x512xf32>
    %16 = vector.broadcast %14 : vector<16x1xf32> to vector<16x512xf32>
    %17 = arith.addf %15, %16 : vector<16x512xf32>
    %18 = math.tanh %17 : vector<16x512xf32>
    %c2 = arith.constant 2 : index
    %c0_14 = arith.constant 0 : index
    %c0_15 = arith.constant 0 : index
    %19 = vector.load %arg2[%c2, %c0_14, %c0_15] : memref<9x16x16xf32, #tpu.memory_space<vmem>>, vector<1x16x16xf32>
    %20 = vector.shape_cast %19 : vector<1x16x16xf32> to vector<16x16xf32>
    %c2_16 = arith.constant 2 : index
    %c0_17 = arith.constant 0 : index
    %c0_18 = arith.constant 0 : index
    %21 = vector.load %arg3[%c2_16, %c0_17, %c0_18] : memref<9x16x1xf32, #tpu.memory_space<vmem>>, vector<1x16x1xf32>
    %22 = vector.shape_cast %21 : vector<1x16x1xf32> to vector<16x1xf32>
    %cst_19 = arith.constant dense<0.000000e+00> : vector<16x512xf32>
    %23 = tpu.matmul %20, %18, %cst_19 {dimension_numbers = #tpu.dot_dimension_numbers<[1], [0], [0], [1], [0, 0, 1, 1], [], []>} : vector<16x16xf32>, vector<16x512xf32>, vector<16x512xf32> -> vector<16x512xf32>
    %24 = vector.broadcast %22 : vector<16x1xf32> to vector<16x512xf32>
    %25 = arith.addf %23, %24 : vector<16x512xf32>
    %26 = math.tanh %25 : vector<16x512xf32>
    %c3 = arith.constant 3 : index
    %c0_20 = arith.constant 0 : index
    %c0_21 = arith.constant 0 : index
    %27 = vector.load %arg2[%c3, %c0_20, %c0_21] : memref<9x16x16xf32, #tpu.memory_space<vmem>>, vector<1x16x16xf32>
    %28 = vector.shape_cast %27 : vector<1x16x16xf32> to vector<16x16xf32>
    %c3_22 = arith.constant 3 : index
    %c0_23 = arith.constant 0 : index
    %c0_24 = arith.constant 0 : index
    %29 = vector.load %arg3[%c3_22, %c0_23, %c0_24] : memref<9x16x1xf32, #tpu.memory_space<vmem>>, vector<1x16x1xf32>
    %30 = vector.shape_cast %29 : vector<1x16x1xf32> to vector<16x1xf32>
    %cst_25 = arith.constant dense<0.000000e+00> : vector<16x512xf32>
    %31 = tpu.matmul %28, %26, %cst_25 {dimension_numbers = #tpu.dot_dimension_numbers<[1], [0], [0], [1], [0, 0, 1, 1], [], []>} : vector<16x16xf32>, vector<16x512xf32>, vector<16x512xf32> -> vector<16x512xf32>
    %32 = vector.broadcast %30 : vector<16x1xf32> to vector<16x512xf32>
    %33 = arith.addf %31, %32 : vector<16x512xf32>
    %34 = math.tanh %33 : vector<16x512xf32>
    %c4 = arith.constant 4 : index
    %c0_26 = arith.constant 0 : index
    %c0_27 = arith.constant 0 : index
    %35 = vector.load %arg2[%c4, %c0_26, %c0_27] : memref<9x16x16xf32, #tpu.memory_space<vmem>>, vector<1x16x16xf32>
    %36 = vector.shape_cast %35 : vector<1x16x16xf32> to vector<16x16xf32>
    %c4_28 = arith.constant 4 : index
    %c0_29 = arith.constant 0 : index
    %c0_30 = arith.constant 0 : index
    %37 = vector.load %arg3[%c4_28, %c0_29, %c0_30] : memref<9x16x1xf32, #tpu.memory_space<vmem>>, vector<1x16x1xf32>
    %38 = vector.shape_cast %37 : vector<1x16x1xf32> to vector<16x1xf32>
    %cst_31 = arith.constant dense<0.000000e+00> : vector<16x512xf32>
    %39 = tpu.matmul %36, %34, %cst_31 {dimension_numbers = #tpu.dot_dimension_numbers<[1], [0], [0], [1], [0, 0, 1, 1], [], []>} : vector<16x16xf32>, vector<16x512xf32>, vector<16x512xf32> -> vector<16x512xf32>
    %40 = vector.broadcast %38 : vector<16x1xf32> to vector<16x512xf32>
    %41 = arith.addf %39, %40 : vector<16x512xf32>
    %42 = math.tanh %41 : vector<16x512xf32>
    %c5 = arith.constant 5 : index
    %c0_32 = arith.constant 0 : index
    %c0_33 = arith.constant 0 : index
    %43 = vector.load %arg2[%c5, %c0_32, %c0_33] : memref<9x16x16xf32, #tpu.memory_space<vmem>>, vector<1x16x16xf32>
    %44 = vector.shape_cast %43 : vector<1x16x16xf32> to vector<16x16xf32>
    %c5_34 = arith.constant 5 : index
    %c0_35 = arith.constant 0 : index
    %c0_36 = arith.constant 0 : index
    %45 = vector.load %arg3[%c5_34, %c0_35, %c0_36] : memref<9x16x1xf32, #tpu.memory_space<vmem>>, vector<1x16x1xf32>
    %46 = vector.shape_cast %45 : vector<1x16x1xf32> to vector<16x1xf32>
    %cst_37 = arith.constant dense<0.000000e+00> : vector<16x512xf32>
    %47 = tpu.matmul %44, %42, %cst_37 {dimension_numbers = #tpu.dot_dimension_numbers<[1], [0], [0], [1], [0, 0, 1, 1], [], []>} : vector<16x16xf32>, vector<16x512xf32>, vector<16x512xf32> -> vector<16x512xf32>
    %48 = vector.broadcast %46 : vector<16x1xf32> to vector<16x512xf32>
    %49 = arith.addf %47, %48 : vector<16x512xf32>
    %50 = math.tanh %49 : vector<16x512xf32>
    %c6 = arith.constant 6 : index
    %c0_38 = arith.constant 0 : index
    %c0_39 = arith.constant 0 : index
    %51 = vector.load %arg2[%c6, %c0_38, %c0_39] : memref<9x16x16xf32, #tpu.memory_space<vmem>>, vector<1x16x16xf32>
    %52 = vector.shape_cast %51 : vector<1x16x16xf32> to vector<16x16xf32>
    %c6_40 = arith.constant 6 : index
    %c0_41 = arith.constant 0 : index
    %c0_42 = arith.constant 0 : index
    %53 = vector.load %arg3[%c6_40, %c0_41, %c0_42] : memref<9x16x1xf32, #tpu.memory_space<vmem>>, vector<1x16x1xf32>
    %54 = vector.shape_cast %53 : vector<1x16x1xf32> to vector<16x1xf32>
    %cst_43 = arith.constant dense<0.000000e+00> : vector<16x512xf32>
    %55 = tpu.matmul %52, %50, %cst_43 {dimension_numbers = #tpu.dot_dimension_numbers<[1], [0], [0], [1], [0, 0, 1, 1], [], []>} : vector<16x16xf32>, vector<16x512xf32>, vector<16x512xf32> -> vector<16x512xf32>
    %56 = vector.broadcast %54 : vector<16x1xf32> to vector<16x512xf32>
    %57 = arith.addf %55, %56 : vector<16x512xf32>
    %58 = math.tanh %57 : vector<16x512xf32>
    %c7 = arith.constant 7 : index
    %c0_44 = arith.constant 0 : index
    %c0_45 = arith.constant 0 : index
    %59 = vector.load %arg2[%c7, %c0_44, %c0_45] : memref<9x16x16xf32, #tpu.memory_space<vmem>>, vector<1x16x16xf32>
    %60 = vector.shape_cast %59 : vector<1x16x16xf32> to vector<16x16xf32>
    %c7_46 = arith.constant 7 : index
    %c0_47 = arith.constant 0 : index
    %c0_48 = arith.constant 0 : index
    %61 = vector.load %arg3[%c7_46, %c0_47, %c0_48] : memref<9x16x1xf32, #tpu.memory_space<vmem>>, vector<1x16x1xf32>
    %62 = vector.shape_cast %61 : vector<1x16x1xf32> to vector<16x1xf32>
    %cst_49 = arith.constant dense<0.000000e+00> : vector<16x512xf32>
    %63 = tpu.matmul %60, %58, %cst_49 {dimension_numbers = #tpu.dot_dimension_numbers<[1], [0], [0], [1], [0, 0, 1, 1], [], []>} : vector<16x16xf32>, vector<16x512xf32>, vector<16x512xf32> -> vector<16x512xf32>
    %64 = vector.broadcast %62 : vector<16x1xf32> to vector<16x512xf32>
    %65 = arith.addf %63, %64 : vector<16x512xf32>
    %66 = math.tanh %65 : vector<16x512xf32>
    %c8 = arith.constant 8 : index
    %c0_50 = arith.constant 0 : index
    %c0_51 = arith.constant 0 : index
    %67 = vector.load %arg2[%c8, %c0_50, %c0_51] : memref<9x16x16xf32, #tpu.memory_space<vmem>>, vector<1x16x16xf32>
    %68 = vector.shape_cast %67 : vector<1x16x16xf32> to vector<16x16xf32>
    %c8_52 = arith.constant 8 : index
    %c0_53 = arith.constant 0 : index
    %c0_54 = arith.constant 0 : index
    %69 = vector.load %arg3[%c8_52, %c0_53, %c0_54] : memref<9x16x1xf32, #tpu.memory_space<vmem>>, vector<1x16x1xf32>
    %70 = vector.shape_cast %69 : vector<1x16x1xf32> to vector<16x1xf32>
    %cst_55 = arith.constant dense<0.000000e+00> : vector<16x512xf32>
    %71 = tpu.matmul %68, %66, %cst_55 {dimension_numbers = #tpu.dot_dimension_numbers<[1], [0], [0], [1], [0, 0, 1, 1], [], []>} : vector<16x16xf32>, vector<16x512xf32>, vector<16x512xf32> -> vector<16x512xf32>
    %72 = vector.broadcast %70 : vector<16x1xf32> to vector<16x512xf32>
    %73 = arith.addf %71, %72 : vector<16x512xf32>
    %74 = vector.extract_strided_slice %73 {offsets = [0, 0], sizes = [1, 512], strides = [1, 1]} : vector<16x512xf32> to vector<1x512xf32>
    %c0_56 = arith.constant 0 : index
    %c0_57 = arith.constant 0 : index
    %75 = vector.load %arg4[%c0_56, %c0_57] : memref<1x512xf32, #tpu.memory_space<vmem>>, vector<1x512xf32>
    tpu.vector_store %arg4[%c0_56, %c0_57], %74 {strides = array<i32>} : memref<1x512xf32, #tpu.memory_space<vmem>>, vector<1x512xf32>,
    return
  }
  func.func @transform_0(%arg0: i32) -> (i32, i32) {
    %c0_i32 = arith.constant 0 : i32
    %c0_i32_0 = arith.constant 0 : i32
    return %c0_i32, %arg0 : i32, i32
  }
  func.func @transform_1(%arg0: i32) -> (i32, i32, i32) {
    %c0_i32 = arith.constant 0 : i32
    %c0_i32_0 = arith.constant 0 : i32
    %c0_i32_1 = arith.constant 0 : i32
    %c0_i32_2 = arith.constant 0 : i32
    return %c0_i32, %c0_i32_0, %c0_i32_1 : i32, i32, i32
  }
  func.func @transform_2(%arg0: i32) -> (i32, i32, i32) {
    %c0_i32 = arith.constant 0 : i32
    %c0_i32_0 = arith.constant 0 : i32
    %c0_i32_1 = arith.constant 0 : i32
    %c0_i32_2 = arith.constant 0 : i32
    return %c0_i32, %c0_i32_0, %c0_i32_1 : i32, i32, i32
  }
  func.func @transform_3(%arg0: i32) -> (i32, i32) {
    %c0_i32 = arith.constant 0 : i32
    %c0_i32_0 = arith.constant 0 : i32
    return %c0_i32, %arg0 : i32, i32
  }
}

</mosaic_0001>

<llo_original>
// kernel: burgers_pinn_forward.1
$region0: #{burgers_pinn_forward.1}
  #allocation0 [shape = 'u32[]', space=smem, size = 0x4, offset = 0x4, fixed_abs, tag = 'smem constant byte address 0x4 - core index']
  #allocation1 [shape = 'u32[72,128]{1,0:T(1,128)}', space=vmem, size = 0x9000, scoped, tag = 'internal scratch']
  %s0 = inlined_call_operand.hbm [shape: f32[2,1024], index: 0, kind: input, shape index: {}]
  %s1 = inlined_call_operand.vmem [shape: f32[9,16,16], index: 1, kind: input, shape index: {}]
  %s2 = inlined_call_operand.vmem [shape: f32[9,16,1], index: 2, kind: input, shape index: {}]
  %s3 = inlined_call_operand.hbm [shape: f32[1,1024], index: 3, kind: output, shape index: {}]
  %s4 = sld [smem:[#allocation0]]
  $region49: #{burgers_pinn_forward.1} parent=0
    _
  %s6 = ssub.s32 1, %s4
  %s7 = scalar_select 0, %s6, %s4
  $region1: #{burgers_pinn_forward.1} parent=0
    #allocation2 [shape = 'u8[8192]{0}', space=vmem, size = 0x2000, scoped, tag = 'input window, operand 0']
    #allocation3 [shape = 's32[2]{0}', space=sflag, size = 0x8, scoped, tag = 'scoped memory for burgers_pinn_forward.1']
    #allocation4 [shape = 's32[2]{0}', space=sflag, size = 0x8, scoped, tag = 'scoped memory for burgers_pinn_forward.1']
    #allocation5 [shape = 'u8[4096]{0}', space=vmem, size = 0x1000, scoped, tag = 'output window, operand 0']
    %8 = vsyncpa [#allocation3], 0
    %s9 = scalar_lea.sflag [#allocation3], 1
    %10 = vsyncpa %s9, 0
    %11 = vsyncpa [#allocation4], 0
    %s12 = scalar_lea.sflag [#allocation4], 1
    %13 = vsyncpa %s12, 0
    loop: start=0, step=1, limit=4
    $region2: #{burgers_pinn_forward.1} parent=1 // loop_pre_header
      _
    $region3: #{burgers_pinn_forward.1} parent=1 // loop_header
      %s15 = sphi 0, %s19
      %p16 = scmp.ge.s32.totalorder %s15, 4
      %s25 = sphi 0, %s27
      %s28 = sphi 0, %s25
      %s29 = sphi 0, %s28
      %s45 = sphi 0, %s29
      %s49 = sphi 0, %s49
      %s51 = sphi 0, %s49
      %s52 = sphi 0, %s51
      %s66 = sphi 0, %s52
      %s70 = sphi 0, %s70
      %s72 = sphi 0, %s70
      %s73 = sphi 0, %s72
      %s87 = sphi 0, %s73
      %s93 = sphi 0, %s95
      %s96 = sphi 0, %s93
      %s97 = sphi 0, %s96
      %s113 = sphi 0, %s97
    $region4: #{burgers_pinn_forward.1} parent=1 // loop_header_branch
      %18 = sbr.rel (%p16) target = $region8
    $region5: #{burgers_pinn_forward.1} parent=1 // loop_body
      %s20 = ssub.s32 %s15, 1
      %s21 = ssub.s32 %s15, 2
      %s22 = sadd.s32 %s15, 1
      %s23 = ssub.s32 %s15, %s22
      %p24 = scmp.eq.s32.totalorder %s23, 0
      %s26 = sadd.s32 %s25, 1
      %s27 = scalar_select %p24, %s25, %s26
      %p30 = pneg %p24
      %p31 = scmp.eq.s32.totalorder %s15, 1
      %p32 = por %p30, %p31
      %p33 = scmp.ne.s32.totalorder %s25, %s28
      %p34 = scmp.eq.s32.totalorder %s15, 0
      %p35 = por %p33, %p34
      %p36 = scmp.ne.s32.totalorder %s25, %s28
      %p37 = scmp.eq.s32.totalorder %s20, 1
      %p38 = por %p36, %p37
      %p39 = scmp.ne.s32.totalorder %s28, %s29
      %p40 = scmp.eq.s32.totalorder %s20, 0
      %p41 = por %p39, %p40
      %p42 = scmp.ne.s32.totalorder %s28, %s29
      %p43 = scmp.eq.s32.totalorder %s21, 1
      %p44 = por %p42, %p43
      %p46 = scmp.ne.s32.totalorder %s29, %s45
      %p47 = scmp.eq.s32.totalorder %s21, 0
      %p48 = por %p46, %p47
      %s50 = sadd.s32 %s49, 1
      %p53 = scmp.eq.s32.totalorder %s15, 1
      %p54 = scmp.ne.s32.totalorder %s49, %s51
      %p55 = scmp.eq.s32.totalorder %s15, 0
      %p56 = por %p54, %p55
      %p57 = scmp.ne.s32.totalorder %s49, %s51
      %p58 = scmp.eq.s32.totalorder %s20, 1
      %p59 = por %p57, %p58
      %p60 = scmp.ne.s32.totalorder %s51, %s52
      %p61 = scmp.eq.s32.totalorder %s20, 0
      %p62 = por %p60, %p61
      %p63 = scmp.ne.s32.totalorder %s51, %s52
      %p64 = scmp.eq.s32.totalorder %s21, 1
      %p65 = por %p63, %p64
      %p67 = scmp.ne.s32.totalorder %s52, %s66
      %p68 = scmp.eq.s32.totalorder %s21, 0
      %p69 = por %p67, %p68
      %s71 = sadd.s32 %s70, 1
      %p74 = scmp.eq.s32.totalorder %s15, 1
      %p75 = scmp.ne.s32.totalorder %s70, %s72
      %p76 = scmp.eq.s32.totalorder %s15, 0
      %p77 = por %p75, %p76
      %p78 = scmp.ne.s32.totalorder %s70, %s72
      %p79 = scmp.eq.s32.totalorder %s20, 1
      %p80 = por %p78, %p79
      %p81 = scmp.ne.s32.totalorder %s72, %s73
      %p82 = scmp.eq.s32.totalorder %s20, 0
      %p83 = por %p81, %p82
      %p84 = scmp.ne.s32.totalorder %s72, %s73
      %p85 = scmp.eq.s32.totalorder %s21, 1
      %p86 = por %p84, %p85
      %p88 = scmp.ne.s32.totalorder %s73, %s87
      %p89 = scmp.eq.s32.totalorder %s21, 0
      %p90 = por %p88, %p89
      %s91 = ssub.s32 %s15, %s22
      %p92 = scmp.eq.s32.totalorder %s91, 0
      %s94 = sadd.s32 %s93, 1
      %s95 = scalar_select %p92, %s93, %s94
      %p98 = pneg %p92
      %p99 = scmp.eq.s32.totalorder %s15, 1
      %p100 = por %p98, %p99
      %p101 = scmp.ne.s32.totalorder %s93, %s96
      %p102 = scmp.eq.s32.totalorder %s15, 0
      %p103 = por %p101, %p102
      %p104 = scmp.ne.s32.totalorder %s93, %s96
      %p105 = scmp.eq.s32.totalorder %s20, 1
      %p106 = por %p104, %p105
      %p107 = scmp.ne.s32.totalorder %s96, %s97
      %p108 = scmp.eq.s32.totalorder %s20, 0
      %p109 = por %p107, %p108
      %p110 = scmp.ne.s32.totalorder %s96, %s97
      %p111 = scmp.eq.s32.totalorder %s21, 1
      %p112 = por %p110, %p111
      %p114 = scmp.ne.s32.totalorder %s97, %s113
      %p115 = scmp.eq.s32.totalorder %s21, 0
      %p116 = por %p114, %p115
      %p117 = scmp.le.s32.totalorder 1, %s15
      %p118 = scmp.lt.s32.totalorder %s15, 3
      %p119 = pnand %p117, %p118
      %p120 = pneg %p119
      // Predicated region
      $region9: #{burgers_pinn_forward.1} parent=5 // pred_check
        _
      $region10: #{burgers_pinn_forward.1} parent=5 // pred_check_branch
        %122 = sbr.rel (%p119) target = $region12
      $region11: #{burgers_pinn_forward.1} parent=5 // pred_region
        %s123 = ssub.s32 %s15, 1
        // Predicated region
        $region13: #{burgers_pinn_forward.1} parent=11 // pred_check
          %p124 = pneg %p62
        $region14: #{burgers_pinn_forward.1} parent=11 // pred_check_branch
          %126 = sbr.rel (%p124) target = $region16
        $region15: #{burgers_pinn_forward.1} parent=11 // pred_region
          _
        $region16: #{burgers_pinn_forward.1} parent=11 // pred_fallthru
          _
        // Predicated region
        $region17: #{burgers_pinn_forward.1} parent=11 // pred_check
          %p127 = pneg %p83
        $region18: #{burgers_pinn_forward.1} parent=11 // pred_check_branch
          %129 = sbr.rel (%p127) target = $region20
        $region19: #{burgers_pinn_forward.1} parent=11 // pred_region
          _
        $region20: #{burgers_pinn_forward.1} parent=11 // pred_fallthru
          _
      $region12: #{burgers_pinn_forward.1} parent=5 // pred_fallthru
        _
      %p130 = scmp.lt.s32.totalorder %s15, 2
      // Predicated region
      $region21: #{burgers_pinn_forward.1} parent=5 // pred_check
        %p131 = pneg %p130
      $region22: #{burgers_pinn_forward.1} parent=5 // pred_check_branch
        %133 = sbr.rel (%p131) target = $region24
      $region23: #{burgers_pinn_forward.1} parent=5 // pred_region
        // Predicated region
        $region25: #{burgers_pinn_forward.1} parent=23 // pred_check
          %p134 = pneg %p35
        $region26: #{burgers_pinn_forward.1} parent=23 // pred_check_branch
          %136 = sbr.rel (%p134) target = $region28
        $region27: #{burgers_pinn_forward.1} parent=23 // pred_region
          %s137 = sand.u32 %s25, 1
          %s138 = scalar_lea.sflag [#allocation3], %s137
          %s139 = sand.u32 %s25, 1
          %s140 = smul.addr %s139, 8
          %s141 = scalar_lea.vmem [#allocation2], %s140
          %s142 = smul.u32 4, %s15
          %144 = vsyncadd %s138, 0
          %s145 = smul.addr %s142, 2
          %s146 = scalar_lea.hbm %s0, %s145
          %s148 = sshll.u32 %s146, 4
          %s149 = int_to_ptr.hbm [resolvable:$true] %s148
          %s150 = sshll.u32 %s141, 4
          %s151 = int_to_ptr.vmem [resolvable:$true] %s150
          %153 = dma.hbm_to_vmem [thread:$0]  %s149, 128, %s151, %s138
        $region28: #{burgers_pinn_forward.1} parent=23 // pred_fallthru
          _
      $region24: #{burgers_pinn_forward.1} parent=5 // pred_fallthru
        _
      %p154 = scmp.le.s32.totalorder 1, %s15
      %p155 = scmp.lt.s32.totalorder %s15, 3
      %p156 = pnand %p154, %p155
      %p157 = pneg %p156
      // Predicated region
      $region29: #{burgers_pinn_forward.1} parent=5 // pred_check
        _
      $region30: #{burgers_pinn_forward.1} parent=5 // pred_check_branch
        %159 = sbr.rel (%p156) target = $region32
      $region31: #{burgers_pinn_forward.1} parent=5 // pred_region
        %s160 = ssub.s32 %s15, 1
        %s161 = sand.u32 %s28, 1
        %s162 = scalar_lea.sflag [#allocation3], %s161
        %s163 = sand.u32 %s28, 1
        %s164 = smul.addr %s163, 8
        %s165 = scalar_lea.vmem [#allocation2], %s164
        // Predicated region
        $region33: #{burgers_pinn_forward.1} parent=31 // pred_check
          %p166 = pneg %p41
        $region34: #{burgers_pinn_forward.1} parent=31 // pred_check_branch
          %168 = sbr.rel (%p166) target = $region36
        $region35: #{burgers_pinn_forward.1} parent=31 // pred_region
          %170 = dma.done %s162, 128
        $region36: #{burgers_pinn_forward.1} parent=31 // pred_fallthru
          _
        %s171 = sand.u32 %s28, 1
        %s172 = scalar_lea.sflag [#allocation3], %s171
        %s173 = sand.u32 %s28, 1
        %s174 = smul.addr %s173, 8
        %s175 = scalar_lea.vmem [#allocation2], %s174
        %p176 = pneg %p41
        %p177 = pneg %p38
        %p178 = pneg %p62
        %p179 = pneg %p59
        %p180 = pneg %p83
        %p181 = pneg %p80
        %p182 = pneg %p109
        %p183 = pneg %p106
        %s184 = sand.u32 %s96, 1
        %s185 = scalar_lea.sflag [#allocation4], %s184
        %s186 = sand.u32 %s96, 1
        %s187 = smul.addr %s186, 4
        %s188 = scalar_lea.vmem [#allocation5], %s187
        %s189 = smul.u32 4, %s20
        %s190 = smul.u32 4, %s20
        %v191 = vld [vmem:[%s165] sm:$0xff]
        %193 = vst [vmem:[#allocation1] ss:$4 sm:$0xff] %v191
        %v194 = vld.sshfl [vmem:[#allocation1] sm:$0xff pattern:$0x73625140]
        %v195 = vld.sshfl [vmem:[#allocation1 + $0x8] sm:$0xff pattern:$0x73625140]
        %v196 = vld.sshfl [vmem:[#allocation1 + $0x10] sm:$0xff pattern:$0x73625140]
        %v197 = vld.sshfl [vmem:[#allocation1 + $0x18] sm:$0xff pattern:$0x73625140]
        %vm202 = vcmask 1041408
        %v203 = vsel %vm202, %v194, 0.0
        %v204 = vsel %vm202, %v195, 0.0
        %v205 = vsel %vm202, %v196, 0.0
        %v206 = vsel %vm202, %v197, 0.0
        %v207 = vld [vmem:[%s1] sm:$0xff]
        %v208 = vld [vmem:[%s1 + $0x8] sm:$0xff]
        %v209 = vld [vmem:[%s2] sm:$0xff]
        %v210 = vld [vmem:[%s2 + $0x8] sm:$0xff]
        %212 = vset.pattern.permute.xlu0 0
        %213 = vperm.xlu0 %212, %v209
        %v214 = vpop.permute.xlu0 %213
        %217 = vset.pattern.permute.xlu0 0
        %218 = vperm.xlu0 %217, %v210
        %v219 = vpop.permute.xlu0 %218
        %vm221 = vcmask 130048
        %v223 = vsel %vm221, %v207, 0
        %v226 = vsel %vm221, %v208, 0
        %228 = vmatpush.msra.mxu0 0.0
        %229 = vmatpush.msra.mxu0 0.0
        %230 = vmatpush.msra.mxu0 0.0
        %231 = vmatpush.msra.mxu0 0.0
        %232 = vmatpush.msra.mxu0 0.0
        %233 = vmatpush.msra.mxu0 0.0
        %234 = vmatpush.msra.mxu0 0.0
        %235 = vmatpush.msra.mxu0 0.0
        %236 = vmatpush.msra.mxu0 0.0
        %237 = vmatpush.msra.mxu0 0.0
        %238 = vmatpush.msra.mxu0 0.0
        %239 = vmatpush.msra.mxu0 0.0
        %240 = vmatpush.msra.mxu0 0.0
        %241 = vmatpush.msra.mxu0 0.0
        %242 = vmatpush.msra.mxu0 0.0
        %243 = vmatpush.msra.mxu0 %v203
        %244 = vmatmul.f32.gmra.mxu0 %v223
        %v245 = vpop.f32.mrf.mxu0
        %v246 = vadd.f32 %v214, %v245
        %247 = vmatmul.f32.gmra.mxu0 %v226
        %v248 = vpop.f32.mrf.mxu0
        %v249 = vadd.f32 %v219, %v248
        %250 = vdwg.mxu0
        %251 = vmatpush.msra.mxu0 0.0
        %252 = vmatpush.msra.mxu0 0.0
        %253 = vmatpush.msra.mxu0 0.0
        %254 = vmatpush.msra.mxu0 0.0
        %255 = vmatpush.msra.mxu0 0.0
        %256 = vmatpush.msra.mxu0 0.0
        %257 = vmatpush.msra.mxu0 0.0
        %258 = vmatpush.msra.mxu0 0.0
        %259 = vmatpush.msra.mxu0 0.0
        %260 = vmatpush.msra.mxu0 0.0
        %261 = vmatpush.msra.mxu0 0.0
        %262 = vmatpush.msra.mxu0 0.0
        %263 = vmatpush.msra.mxu0 0.0
        %264 = vmatpush.msra.mxu0 0.0
        %265 = vmatpush.msra.mxu0 0.0
        %266 = vmatpush.msra.mxu0 %v204
        %267 = vmatmul.f32.gmra.mxu0 %v223
        %v268 = vpop.f32.mrf.mxu0
        %v269 = vadd.f32 %v214, %v268
        %270 = vmatmul.f32.gmra.mxu0 %v226
        %v271 = vpop.f32.mrf.mxu0
        %v272 = vadd.f32 %v219, %v271
        %273 = vdwg.mxu0
        %274 = vmatpush.msra.mxu0 0.0
        %275 = vmatpush.msra.mxu0 0.0
        %276 = vmatpush.msra.mxu0 0.0
        %277 = vmatpush.msra.mxu0 0.0
        %278 = vmatpush.msra.mxu0 0.0
        %279 = vmatpush.msra.mxu0 0.0
        %280 = vmatpush.msra.mxu0 0.0
        %281 = vmatpush.msra.mxu0 0.0
        %282 = vmatpush.msra.mxu0 0.0
        %283 = vmatpush.msra.mxu0 0.0
        %284 = vmatpush.msra.mxu0 0.0
        %285 = vmatpush.msra.mxu0 0.0
        %286 = vmatpush.msra.mxu0 0.0
        %287 = vmatpush.msra.mxu0 0.0
        %288 = vmatpush.msra.mxu0 0.0
        %289 = vmatpush.msra.mxu0 %v205
        %290 = vmatmul.f32.gmra.mxu0 %v223
        %v291 = vpop.f32.mrf.mxu0
        %v292 = vadd.f32 %v214, %v291
        %293 = vmatmul.f32.gmra.mxu0 %v226
        %v294 = vpop.f32.mrf.mxu0
        %v295 = vadd.f32 %v219, %v294
        %296 = vdwg.mxu0
        %297 = vmatpush.msra.mxu0 0.0
        %298 = vmatpush.msra.mxu0 0.0
        %299 = vmatpush.msra.mxu0 0.0
        %300 = vmatpush.msra.mxu0 0.0
        %301 = vmatpush.msra.mxu0 0.0
        %302 = vmatpush.msra.mxu0 0.0
        %303 = vmatpush.msra.mxu0 0.0
        %304 = vmatpush.msra.mxu0 0.0
        %305 = vmatpush.msra.mxu0 0.0
        %306 = vmatpush.msra.mxu0 0.0
        %307 = vmatpush.msra.mxu0 0.0
        %308 = vmatpush.msra.mxu0 0.0
        %309 = vmatpush.msra.mxu0 0.0
        %310 = vmatpush.msra.mxu0 0.0
        %311 = vmatpush.msra.mxu0 0.0
        %312 = vmatpush.msra.mxu0 %v206
        %313 = vmatmul.f32.gmra.mxu0 %v223
        %v314 = vpop.f32.mrf.mxu0
        %v315 = vadd.f32 %v214, %v314
        %316 = vmatmul.f32.gmra.mxu0 %v226
        %v317 = vpop.f32.mrf.mxu0
        %v318 = vadd.f32 %v219, %v317
        %319 = vdwg.mxu0
        %v320 = vtanh.pop %v246
        %v321 = vtanh.pop %v269
        %v322 = vtanh.pop %v292
        %v323 = vtanh.pop %v315
        %v324 = vtanh.pop %v249
        %v325 = vtanh.pop %v272
        %v326 = vtanh.pop %v295
        %v327 = vtanh.pop %v318
        %s328 = scalar_lea.vmem %s1, 16
        %v329 = vld [vmem:[%s328] sm:$0xff]
        %v330 = vld [vmem:[%s328 + $0x8] sm:$0xff]
        %s331 = scalar_lea.vmem %s2, 16
        %v332 = vld [vmem:[%s331] sm:$0xff]
        %v333 = vld [vmem:[%s331 + $0x8] sm:$0xff]
        %335 = vset.pattern.permute.xlu0 0
        %336 = vperm.xlu0 %335, %v332
        %v337 = vpop.permute.xlu0 %336
        %340 = vset.pattern.permute.xlu0 0
        %341 = vperm.xlu0 %340, %v333
        %v342 = vpop.permute.xlu0 %341
        %v345 = vsel %vm221, %v329, 0
        %v348 = vsel %vm221, %v330, 0
        %350 = vmatpush.msra.mxu0 0.0
        %351 = vmatpush.msra.mxu0 0.0
        %352 = vmatpush.msra.mxu0 0.0
        %353 = vmatpush.msra.mxu0 0.0
        %354 = vmatpush.msra.mxu0 0.0
        %355 = vmatpush.msra.mxu0 0.0
        %356 = vmatpush.msra.mxu0 0.0
        %357 = vmatpush.msra.mxu0 0.0
        %358 = vmatpush.msra.mxu0 0.0
        %359 = vmatpush.msra.mxu0 0.0
        %360 = vmatpush.msra.mxu0 0.0
        %361 = vmatpush.msra.mxu0 0.0
        %362 = vmatpush.msra.mxu0 0.0
        %363 = vmatpush.msra.mxu0 0.0
        %364 = vmatpush.msra.mxu0 %v324
        %365 = vmatpush.msra.mxu0 %v320
        %366 = vmatmul.f32.gmra.mxu0 %v345
        %v367 = vpop.f32.mrf.mxu0
        %v368 = vadd.f32 %v337, %v367
        %369 = vmatmul.f32.gmra.mxu0 %v348
        %v370 = vpop.f32.mrf.mxu0
        %v371 = vadd.f32 %v342, %v370
        %372 = vdwg.mxu0
        %373 = vmatpush.msra.mxu0 0.0
        %374 = vmatpush.msra.mxu0 0.0
        %375 = vmatpush.msra.mxu0 0.0
        %376 = vmatpush.msra.mxu0 0.0
        %377 = vmatpush.msra.mxu0 0.0
        %378 = vmatpush.msra.mxu0 0.0
        %379 = vmatpush.msra.mxu0 0.0
        %380 = vmatpush.msra.mxu0 0.0
        %381 = vmatpush.msra.mxu0 0.0
        %382 = vmatpush.msra.mxu0 0.0
        %383 = vmatpush.msra.mxu0 0.0
        %384 = vmatpush.msra.mxu0 0.0
        %385 = vmatpush.msra.mxu0 0.0
        %386 = vmatpush.msra.mxu0 0.0
        %387 = vmatpush.msra.mxu0 %v325
        %388 = vmatpush.msra.mxu0 %v321
        %389 = vmatmul.f32.gmra.mxu0 %v345
        %v390 = vpop.f32.mrf.mxu0
        %v391 = vadd.f32 %v337, %v390
        %392 = vmatmul.f32.gmra.mxu0 %v348
        %v393 = vpop.f32.mrf.mxu0
        %v394 = vadd.f32 %v342, %v393
        %395 = vdwg.mxu0
        %396 = vmatpush.msra.mxu0 0.0
        %397 = vmatpush.msra.mxu0 0.0
        %398 = vmatpush.msra.mxu0 0.0
        %399 = vmatpush.msra.mxu0 0.0
        %400 = vmatpush.msra.mxu0 0.0
        %401 = vmatpush.msra.mxu0 0.0
        %402 = vmatpush.msra.mxu0 0.0
        %403 = vmatpush.msra.mxu0 0.0
        %404 = vmatpush.msra.mxu0 0.0
        %405 = vmatpush.msra.mxu0 0.0
        %406 = vmatpush.msra.mxu0 0.0
        %407 = vmatpush.msra.mxu0 0.0
        %408 = vmatpush.msra.mxu0 0.0
        %409 = vmatpush.msra.mxu0 0.0
        %410 = vmatpush.msra.mxu0 %v326
        %411 = vmatpush.msra.mxu0 %v322
        %412 = vmatmul.f32.gmra.mxu0 %v345
        %v413 = vpop.f32.mrf.mxu0
        %v414 = vadd.f32 %v337, %v413
        %415 = vmatmul.f32.gmra.mxu0 %v348
        %v416 = vpop.f32.mrf.mxu0
        %v417 = vadd.f32 %v342, %v416
        %418 = vdwg.mxu0
        %419 = vmatpush.msra.mxu0 0.0
        %420 = vmatpush.msra.mxu0 0.0
        %421 = vmatpush.msra.mxu0 0.0
        %422 = vmatpush.msra.mxu0 0.0
        %423 = vmatpush.msra.mxu0 0.0
        %424 = vmatpush.msra.mxu0 0.0
        %425 = vmatpush.msra.mxu0 0.0
        %426 = vmatpush.msra.mxu0 0.0
        %427 = vmatpush.msra.mxu0 0.0
        %428 = vmatpush.msra.mxu0 0.0
        %429 = vmatpush.msra.mxu0 0.0
        %430 = vmatpush.msra.mxu0 0.0
        %431 = vmatpush.msra.mxu0 0.0
        %432 = vmatpush.msra.mxu0 0.0
        %433 = vmatpush.msra.mxu0 %v327
        %434 = vmatpush.msra.mxu0 %v323
        %435 = vmatmul.f32.gmra.mxu0 %v345
        %v436 = vpop.f32.mrf.mxu0
        %v437 = vadd.f32 %v337, %v436
        %438 = vmatmul.f32.gmra.mxu0 %v348
        %v439 = vpop.f32.mrf.mxu0
        %v440 = vadd.f32 %v342, %v439
        %441 = vdwg.mxu0
        %v442 = vtanh.pop %v368
        %v443 = vtanh.pop %v391
        %v444 = vtanh.pop %v414
        %v445 = vtanh.pop %v437
        %v446 = vtanh.pop %v371
        %v447 = vtanh.pop %v394
        %v448 = vtanh.pop %v417
        %v449 = vtanh.pop %v440
        %s450 = scalar_lea.vmem %s1, 32
        %v451 = vld [vmem:[%s450] sm:$0xff]
        %v452 = vld [vmem:[%s450 + $0x8] sm:$0xff]
        %s453 = scalar_lea.vmem %s2, 32
        %v454 = vld [vmem:[%s453] sm:$0xff]
        %v455 = vld [vmem:[%s453 + $0x8] sm:$0xff]
        %457 = vset.pattern.permute.xlu0 0
        %458 = vperm.xlu0 %457, %v454
        %v459 = vpop.permute.xlu0 %458
        %462 = vset.pattern.permute.xlu0 0
        %463 = vperm.xlu0 %462, %v455
        %v464 = vpop.permute.xlu0 %463
        %v467 = vsel %vm221, %v451, 0
        %v470 = vsel %vm221, %v452, 0
        %472 = vmatpush.msra.mxu0 0.0
        %473 = vmatpush.msra.mxu0 0.0
        %474 = vmatpush.msra.mxu0 0.0
        %475 = vmatpush.msra.mxu0 0.0
        %476 = vmatpush.msra.mxu0 0.0
        %477 = vmatpush.msra.mxu0 0.0
        %478 = vmatpush.msra.mxu0 0.0
        %479 = vmatpush.msra.mxu0 0.0
        %480 = vmatpush.msra.mxu0 0.0
        %481 = vmatpush.msra.mxu0 0.0
        %482 = vmatpush.msra.mxu0 0.0
        %483 = vmatpush.msra.mxu0 0.0
        %484 = vmatpush.msra.mxu0 0.0
        %485 = vmatpush.msra.mxu0 0.0
        %486 = vmatpush.msra.mxu0 %v446
        %487 = vmatpush.msra.mxu0 %v442
        %488 = vmatmul.f32.gmra.mxu0 %v467
        %v489 = vpop.f32.mrf.mxu0
        %v490 = vadd.f32 %v459, %v489
        %491 = vmatmul.f32.gmra.mxu0 %v470
        %v492 = vpop.f32.mrf.mxu0
        %v493 = vadd.f32 %v464, %v492
        %494 = vdwg.mxu0
        %495 = vmatpush.msra.mxu0 0.0
        %496 = vmatpush.msra.mxu0 0.0
        %497 = vmatpush.msra.mxu0 0.0
        %498 = vmatpush.msra.mxu0 0.0
        %499 = vmatpush.msra.mxu0 0.0
        %500 = vmatpush.msra.mxu0 0.0
        %501 = vmatpush.msra.mxu0 0.0
        %502 = vmatpush.msra.mxu0 0.0
        %503 = vmatpush.msra.mxu0 0.0
        %504 = vmatpush.msra.mxu0 0.0
        %505 = vmatpush.msra.mxu0 0.0
        %506 = vmatpush.msra.mxu0 0.0
        %507 = vmatpush.msra.mxu0 0.0
        %508 = vmatpush.msra.mxu0 0.0
        %509 = vmatpush.msra.mxu0 %v447
        %510 = vmatpush.msra.mxu0 %v443
        %511 = vmatmul.f32.gmra.mxu0 %v467
        %v512 = vpop.f32.mrf.mxu0
        %v513 = vadd.f32 %v459, %v512
        %514 = vmatmul.f32.gmra.mxu0 %v470
        %v515 = vpop.f32.mrf.mxu0
        %v516 = vadd.f32 %v464, %v515
        %517 = vdwg.mxu0
        %518 = vmatpush.msra.mxu0 0.0
        %519 = vmatpush.msra.mxu0 0.0
        %520 = vmatpush.msra.mxu0 0.0
        %521 = vmatpush.msra.mxu0 0.0
        %522 = vmatpush.msra.mxu0 0.0
        %523 = vmatpush.msra.mxu0 0.0
        %524 = vmatpush.msra.mxu0 0.0
        %525 = vmatpush.msra.mxu0 0.0
        %526 = vmatpush.msra.mxu0 0.0
        %527 = vmatpush.msra.mxu0 0.0
        %528 = vmatpush.msra.mxu0 0.0
        %529 = vmatpush.msra.mxu0 0.0
        %530 = vmatpush.msra.mxu0 0.0
        %531 = vmatpush.msra.mxu0 0.0
        %532 = vmatpush.msra.mxu0 %v448
        %533 = vmatpush.msra.mxu0 %v444
        %534 = vmatmul.f32.gmra.mxu0 %v467
        %v535 = vpop.f32.mrf.mxu0
        %v536 = vadd.f32 %v459, %v535
        %537 = vmatmul.f32.gmra.mxu0 %v470
        %v538 = vpop.f32.mrf.mxu0
        %v539 = vadd.f32 %v464, %v538
        %540 = vdwg.mxu0
        %541 = vmatpush.msra.mxu0 0.0
        %542 = vmatpush.msra.mxu0 0.0
        %543 = vmatpush.msra.mxu0 0.0
        %544 = vmatpush.msra.mxu0 0.0
        %545 = vmatpush.msra.mxu0 0.0
        %546 = vmatpush.msra.mxu0 0.0
        %547 = vmatpush.msra.mxu0 0.0
        %548 = vmatpush.msra.mxu0 0.0
        %549 = vmatpush.msra.mxu0 0.0
        %550 = vmatpush.msra.mxu0 0.0
        %551 = vmatpush.msra.mxu0 0.0
        %552 = vmatpush.msra.mxu0 0.0
        %553 = vmatpush.msra.mxu0 0.0
        %554 = vmatpush.msra.mxu0 0.0
        %555 = vmatpush.msra.mxu0 %v449
        %556 = vmatpush.msra.mxu0 %v445
        %557 = vmatmul.f32.gmra.mxu0 %v467
        %v558 = vpop.f32.mrf.mxu0
        %v559 = vadd.f32 %v459, %v558
        %560 = vmatmul.f32.gmra.mxu0 %v470
        %v561 = vpop.f32.mrf.mxu0
        %v562 = vadd.f32 %v464, %v561
        %563 = vdwg.mxu0
        %v564 = vtanh.pop %v490
        %v565 = vtanh.pop %v513
        %v566 = vtanh.pop %v536
        %v567 = vtanh.pop %v559
        %v568 = vtanh.pop %v493
        %v569 = vtanh.pop %v516
        %v570 = vtanh.pop %v539
        %v571 = vtanh.pop %v562
        %s572 = scalar_lea.vmem %s1, 48
        %v573 = vld [vmem:[%s572] sm:$0xff]
        %v574 = vld [vmem:[%s572 + $0x8] sm:$0xff]
        %s575 = scalar_lea.vmem %s2, 48
        %v576 = vld [vmem:[%s575] sm:$0xff]
        %v577 = vld [vmem:[%s575 + $0x8] sm:$0xff]
        %579 = vset.pattern.permute.xlu0 0
        %580 = vperm.xlu0 %579, %v576
        %v581 = vpop.permute.xlu0 %580
        %584 = vset.pattern.permute.xlu0 0
        %585 = vperm.xlu0 %584, %v577
        %v586 = vpop.permute.xlu0 %585
        %v589 = vsel %vm221, %v573, 0
        %v592 = vsel %vm221, %v574, 0
        %594 = vmatpush.msra.mxu0 0.0
        %595 = vmatpush.msra.mxu0 0.0
        %596 = vmatpush.msra.mxu0 0.0
        %597 = vmatpush.msra.mxu0 0.0
        %598 = vmatpush.msra.mxu0 0.0
        %599 = vmatpush.msra.mxu0 0.0
        %600 = vmatpush.msra.mxu0 0.0
        %601 = vmatpush.msra.mxu0 0.0
        %602 = vmatpush.msra.mxu0 0.0
        %603 = vmatpush.msra.mxu0 0.0
        %604 = vmatpush.msra.mxu0 0.0
        %605 = vmatpush.msra.mxu0 0.0
        %606 = vmatpush.msra.mxu0 0.0
        %607 = vmatpush.msra.mxu0 0.0
        %608 = vmatpush.msra.mxu0 %v568
        %609 = vmatpush.msra.mxu0 %v564
        %610 = vmatmul.f32.gmra.mxu0 %v589
        %v611 = vpop.f32.mrf.mxu0
        %v612 = vadd.f32 %v581, %v611
        %613 = vmatmul.f32.gmra.mxu0 %v592
        %v614 = vpop.f32.mrf.mxu0
        %v615 = vadd.f32 %v586, %v614
        %616 = vdwg.mxu0
        %617 = vmatpush.msra.mxu0 0.0
        %618 = vmatpush.msra.mxu0 0.0
        %619 = vmatpush.msra.mxu0 0.0
        %620 = vmatpush.msra.mxu0 0.0
        %621 = vmatpush.msra.mxu0 0.0
        %622 = vmatpush.msra.mxu0 0.0
        %623 = vmatpush.msra.mxu0 0.0
        %624 = vmatpush.msra.mxu0 0.0
        %625 = vmatpush.msra.mxu0 0.0
        %626 = vmatpush.msra.mxu0 0.0
        %627 = vmatpush.msra.mxu0 0.0
        %628 = vmatpush.msra.mxu0 0.0
        %629 = vmatpush.msra.mxu0 0.0
        %630 = vmatpush.msra.mxu0 0.0
        %631 = vmatpush.msra.mxu0 %v569
        %632 = vmatpush.msra.mxu0 %v565
        %633 = vmatmul.f32.gmra.mxu0 %v589
        %v634 = vpop.f32.mrf.mxu0
        %v635 = vadd.f32 %v581, %v634
        %636 = vmatmul.f32.gmra.mxu0 %v592
        %v637 = vpop.f32.mrf.mxu0
        %v638 = vadd.f32 %v586, %v637
        %639 = vdwg.mxu0
        %640 = vmatpush.msra.mxu0 0.0
        %641 = vmatpush.msra.mxu0 0.0
        %642 = vmatpush.msra.mxu0 0.0
        %643 = vmatpush.msra.mxu0 0.0
        %644 = vmatpush.msra.mxu0 0.0
        %645 = vmatpush.msra.mxu0 0.0
        %646 = vmatpush.msra.mxu0 0.0
        %647 = vmatpush.msra.mxu0 0.0
        %648 = vmatpush.msra.mxu0 0.0
        %649 = vmatpush.msra.mxu0 0.0
        %650 = vmatpush.msra.mxu0 0.0
        %651 = vmatpush.msra.mxu0 0.0
        %652 = vmatpush.msra.mxu0 0.0
        %653 = vmatpush.msra.mxu0 0.0
        %654 = vmatpush.msra.mxu0 %v570
        %655 = vmatpush.msra.mxu0 %v566
        %656 = vmatmul.f32.gmra.mxu0 %v589
        %v657 = vpop.f32.mrf.mxu0
        %v658 = vadd.f32 %v581, %v657
        %659 = vmatmul.f32.gmra.mxu0 %v592
        %v660 = vpop.f32.mrf.mxu0
        %v661 = vadd.f32 %v586, %v660
        %662 = vdwg.mxu0
        %663 = vmatpush.msra.mxu0 0.0
        %664 = vmatpush.msra.mxu0 0.0
        %665 = vmatpush.msra.mxu0 0.0
        %666 = vmatpush.msra.mxu0 0.0
        %667 = vmatpush.msra.mxu0 0.0
        %668 = vmatpush.msra.mxu0 0.0
        %669 = vmatpush.msra.mxu0 0.0
        %670 = vmatpush.msra.mxu0 0.0
        %671 = vmatpush.msra.mxu0 0.0
        %672 = vmatpush.msra.mxu0 0.0
        %673 = vmatpush.msra.mxu0 0.0
        %674 = vmatpush.msra.mxu0 0.0
        %675 = vmatpush.msra.mxu0 0.0
        %676 = vmatpush.msra.mxu0 0.0
        %677 = vmatpush.msra.mxu0 %v571
        %678 = vmatpush.msra.mxu0 %v567
        %679 = vmatmul.f32.gmra.mxu0 %v589
        %v680 = vpop.f32.mrf.mxu0
        %v681 = vadd.f32 %v581, %v680
        %682 = vmatmul.f32.gmra.mxu0 %v592
        %v683 = vpop.f32.mrf.mxu0
        %v684 = vadd.f32 %v586, %v683
        %685 = vdwg.mxu0
        %v686 = vtanh.pop %v612
        %v687 = vtanh.pop %v635
        %v688 = vtanh.pop %v658
        %v689 = vtanh.pop %v681
        %v690 = vtanh.pop %v615
        %v691 = vtanh.pop %v638
        %v692 = vtanh.pop %v661
        %v693 = vtanh.pop %v684
        %s694 = scalar_lea.vmem %s1, 64
        %v695 = vld [vmem:[%s694] sm:$0xff]
        %v696 = vld [vmem:[%s694 + $0x8] sm:$0xff]
        %s697 = scalar_lea.vmem %s2, 64
        %v698 = vld [vmem:[%s697] sm:$0xff]
        %v699 = vld [vmem:[%s697 + $0x8] sm:$0xff]
        %701 = vset.pattern.permute.xlu0 0
        %702 = vperm.xlu0 %701, %v698
        %v703 = vpop.permute.xlu0 %702
        %706 = vset.pattern.permute.xlu0 0
        %707 = vperm.xlu0 %706, %v699
        %v708 = vpop.permute.xlu0 %707
        %v711 = vsel %vm221, %v695, 0
        %v714 = vsel %vm221, %v696, 0
        %716 = vmatpush.msra.mxu0 0.0
        %717 = vmatpush.msra.mxu0 0.0
        %718 = vmatpush.msra.mxu0 0.0
        %719 = vmatpush.msra.mxu0 0.0
        %720 = vmatpush.msra.mxu0 0.0
        %721 = vmatpush.msra.mxu0 0.0
        %722 = vmatpush.msra.mxu0 0.0
        %723 = vmatpush.msra.mxu0 0.0
        %724 = vmatpush.msra.mxu0 0.0
        %725 = vmatpush.msra.mxu0 0.0
        %726 = vmatpush.msra.mxu0 0.0
        %727 = vmatpush.msra.mxu0 0.0
        %728 = vmatpush.msra.mxu0 0.0
        %729 = vmatpush.msra.mxu0 0.0
        %730 = vmatpush.msra.mxu0 %v690
        %731 = vmatpush.msra.mxu0 %v686
        %732 = vmatmul.f32.gmra.mxu0 %v711
        %v733 = vpop.f32.mrf.mxu0
        %v734 = vadd.f32 %v703, %v733
        %735 = vmatmul.f32.gmra.mxu0 %v714
        %v736 = vpop.f32.mrf.mxu0
        %v737 = vadd.f32 %v708, %v736
        %738 = vdwg.mxu0
        %739 = vmatpush.msra.mxu0 0.0
        %740 = vmatpush.msra.mxu0 0.0
        %741 = vmatpush.msra.mxu0 0.0
        %742 = vmatpush.msra.mxu0 0.0
        %743 = vmatpush.msra.mxu0 0.0
        %744 = vmatpush.msra.mxu0 0.0
        %745 = vmatpush.msra.mxu0 0.0
        %746 = vmatpush.msra.mxu0 0.0
        %747 = vmatpush.msra.mxu0 0.0
        %748 = vmatpush.msra.mxu0 0.0
        %749 = vmatpush.msra.mxu0 0.0
        %750 = vmatpush.msra.mxu0 0.0
        %751 = vmatpush.msra.mxu0 0.0
        %752 = vmatpush.msra.mxu0 0.0
        %753 = vmatpush.msra.mxu0 %v691
        %754 = vmatpush.msra.mxu0 %v687
        %755 = vmatmul.f32.gmra.mxu0 %v711
        %v756 = vpop.f32.mrf.mxu0
        %v757 = vadd.f32 %v703, %v756
        %758 = vmatmul.f32.gmra.mxu0 %v714
        %v759 = vpop.f32.mrf.mxu0
        %v760 = vadd.f32 %v708, %v759
        %761 = vdwg.mxu0
        %762 = vmatpush.msra.mxu0 0.0
        %763 = vmatpush.msra.mxu0 0.0
        %764 = vmatpush.msra.mxu0 0.0
        %765 = vmatpush.msra.mxu0 0.0
        %766 = vmatpush.msra.mxu0 0.0
        %767 = vmatpush.msra.mxu0 0.0
        %768 = vmatpush.msra.mxu0 0.0
        %769 = vmatpush.msra.mxu0 0.0
        %770 = vmatpush.msra.mxu0 0.0
        %771 = vmatpush.msra.mxu0 0.0
        %772 = vmatpush.msra.mxu0 0.0
        %773 = vmatpush.msra.mxu0 0.0
        %774 = vmatpush.msra.mxu0 0.0
        %775 = vmatpush.msra.mxu0 0.0
        %776 = vmatpush.msra.mxu0 %v692
        %777 = vmatpush.msra.mxu0 %v688
        %778 = vmatmul.f32.gmra.mxu0 %v711
        %v779 = vpop.f32.mrf.mxu0
        %v780 = vadd.f32 %v703, %v779
        %781 = vmatmul.f32.gmra.mxu0 %v714
        %v782 = vpop.f32.mrf.mxu0
        %v783 = vadd.f32 %v708, %v782
        %784 = vdwg.mxu0
        %785 = vmatpush.msra.mxu0 0.0
        %786 = vmatpush.msra.mxu0 0.0
        %787 = vmatpush.msra.mxu0 0.0
        %788 = vmatpush.msra.mxu0 0.0
        %789 = vmatpush.msra.mxu0 0.0
        %790 = vmatpush.msra.mxu0 0.0
        %791 = vmatpush.msra.mxu0 0.0
        %792 = vmatpush.msra.mxu0 0.0
        %793 = vmatpush.msra.mxu0 0.0
        %794 = vmatpush.msra.mxu0 0.0
        %795 = vmatpush.msra.mxu0 0.0
        %796 = vmatpush.msra.mxu0 0.0
        %797 = vmatpush.msra.mxu0 0.0
        %798 = vmatpush.msra.mxu0 0.0
        %799 = vmatpush.msra.mxu0 %v693
        %800 = vmatpush.msra.mxu0 %v689
        %801 = vmatmul.f32.gmra.mxu0 %v711
        %v802 = vpop.f32.mrf.mxu0
        %v803 = vadd.f32 %v703, %v802
        %804 = vmatmul.f32.gmra.mxu0 %v714
        %v805 = vpop.f32.mrf.mxu0
        %v806 = vadd.f32 %v708, %v805
        %807 = vdwg.mxu0
        %v808 = vtanh.pop %v734
        %v809 = vtanh.pop %v757
        %v810 = vtanh.pop %v780
        %v811 = vtanh.pop %v803
        %v812 = vtanh.pop %v737
        %v813 = vtanh.pop %v760
        %v814 = vtanh.pop %v783
        %v815 = vtanh.pop %v806
        %s816 = scalar_lea.vmem %s1, 80
        %v817 = vld [vmem:[%s816] sm:$0xff]
        %v818 = vld [vmem:[%s816 + $0x8] sm:$0xff]
        %s819 = scalar_lea.vmem %s2, 80
        %v820 = vld [vmem:[%s819] sm:$0xff]
        %v821 = vld [vmem:[%s819 + $0x8] sm:$0xff]
        %823 = vset.pattern.permute.xlu0 0
        %824 = vperm.xlu0 %823, %v820
        %v825 = vpop.permute.xlu0 %824
        %828 = vset.pattern.permute.xlu0 0
        %829 = vperm.xlu0 %828, %v821
        %v830 = vpop.permute.xlu0 %829
        %v833 = vsel %vm221, %v817, 0
        %v836 = vsel %vm221, %v818, 0
        %838 = vmatpush.msra.mxu0 0.0
        %839 = vmatpush.msra.mxu0 0.0
        %840 = vmatpush.msra.mxu0 0.0
        %841 = vmatpush.msra.mxu0 0.0
        %842 = vmatpush.msra.mxu0 0.0
        %843 = vmatpush.msra.mxu0 0.0
        %844 = vmatpush.msra.mxu0 0.0
        %845 = vmatpush.msra.mxu0 0.0
        %846 = vmatpush.msra.mxu0 0.0
        %847 = vmatpush.msra.mxu0 0.0
        %848 = vmatpush.msra.mxu0 0.0
        %849 = vmatpush.msra.mxu0 0.0
        %850 = vmatpush.msra.mxu0 0.0
        %851 = vmatpush.msra.mxu0 0.0
        %852 = vmatpush.msra.mxu0 %v812
        %853 = vmatpush.msra.mxu0 %v808
        %854 = vmatmul.f32.gmra.mxu0 %v833
        %v855 = vpop.f32.mrf.mxu0
        %v856 = vadd.f32 %v825, %v855
        %857 = vmatmul.f32.gmra.mxu0 %v836
        %v858 = vpop.f32.mrf.mxu0
        %v859 = vadd.f32 %v830, %v858
        %860 = vdwg.mxu0
        %861 = vmatpush.msra.mxu0 0.0
        %862 = vmatpush.msra.mxu0 0.0
        %863 = vmatpush.msra.mxu0 0.0
        %864 = vmatpush.msra.mxu0 0.0
        %865 = vmatpush.msra.mxu0 0.0
        %866 = vmatpush.msra.mxu0 0.0
        %867 = vmatpush.msra.mxu0 0.0
        %868 = vmatpush.msra.mxu0 0.0
        %869 = vmatpush.msra.mxu0 0.0
        %870 = vmatpush.msra.mxu0 0.0
        %871 = vmatpush.msra.mxu0 0.0
        %872 = vmatpush.msra.mxu0 0.0
        %873 = vmatpush.msra.mxu0 0.0
        %874 = vmatpush.msra.mxu0 0.0
        %875 = vmatpush.msra.mxu0 %v813
        %876 = vmatpush.msra.mxu0 %v809
        %877 = vmatmul.f32.gmra.mxu0 %v833
        %v878 = vpop.f32.mrf.mxu0
        %v879 = vadd.f32 %v825, %v878
        %880 = vmatmul.f32.gmra.mxu0 %v836
        %v881 = vpop.f32.mrf.mxu0
        %v882 = vadd.f32 %v830, %v881
        %883 = vdwg.mxu0
        %884 = vmatpush.msra.mxu0 0.0
        %885 = vmatpush.msra.mxu0 0.0
        %886 = vmatpush.msra.mxu0 0.0
        %887 = vmatpush.msra.mxu0 0.0
        %888 = vmatpush.msra.mxu0 0.0
        %889 = vmatpush.msra.mxu0 0.0
        %890 = vmatpush.msra.mxu0 0.0
        %891 = vmatpush.msra.mxu0 0.0
        %892 = vmatpush.msra.mxu0 0.0
        %893 = vmatpush.msra.mxu0 0.0
        %894 = vmatpush.msra.mxu0 0.0
        %895 = vmatpush.msra.mxu0 0.0
        %896 = vmatpush.msra.mxu0 0.0
        %897 = vmatpush.msra.mxu0 0.0
        %898 = vmatpush.msra.mxu0 %v814
        %899 = vmatpush.msra.mxu0 %v810
        %900 = vmatmul.f32.gmra.mxu0 %v833
        %v901 = vpop.f32.mrf.mxu0
        %v902 = vadd.f32 %v825, %v901
        %903 = vmatmul.f32.gmra.mxu0 %v836
        %v904 = vpop.f32.mrf.mxu0
        %v905 = vadd.f32 %v830, %v904
        %906 = vdwg.mxu0
        %907 = vmatpush.msra.mxu0 0.0
        %908 = vmatpush.msra.mxu0 0.0
        %909 = vmatpush.msra.mxu0 0.0
        %910 = vmatpush.msra.mxu0 0.0
        %911 = vmatpush.msra.mxu0 0.0
        %912 = vmatpush.msra.mxu0 0.0
        %913 = vmatpush.msra.mxu0 0.0
        %914 = vmatpush.msra.mxu0 0.0
        %915 = vmatpush.msra.mxu0 0.0
        %916 = vmatpush.msra.mxu0 0.0
        %917 = vmatpush.msra.mxu0 0.0
        %918 = vmatpush.msra.mxu0 0.0
        %919 = vmatpush.msra.mxu0 0.0
        %920 = vmatpush.msra.mxu0 0.0
        %921 = vmatpush.msra.mxu0 %v815
        %922 = vmatpush.msra.mxu0 %v811
        %923 = vmatmul.f32.gmra.mxu0 %v833
        %v924 = vpop.f32.mrf.mxu0
        %v925 = vadd.f32 %v825, %v924
        %926 = vmatmul.f32.gmra.mxu0 %v836
        %v927 = vpop.f32.mrf.mxu0
        %v928 = vadd.f32 %v830, %v927
        %929 = vdwg.mxu0
        %v930 = vtanh.pop %v856
        %v931 = vtanh.pop %v879
        %v932 = vtanh.pop %v902
        %v933 = vtanh.pop %v925
        %v934 = vtanh.pop %v859
        %v935 = vtanh.pop %v882
        %v936 = vtanh.pop %v905
        %v937 = vtanh.pop %v928
        %s938 = scalar_lea.vmem %s1, 96
        %v939 = vld [vmem:[%s938] sm:$0xff]
        %v940 = vld [vmem:[%s938 + $0x8] sm:$0xff]
        %s941 = scalar_lea.vmem %s2, 96
        %v942 = vld [vmem:[%s941] sm:$0xff]
        %v943 = vld [vmem:[%s941 + $0x8] sm:$0xff]
        %945 = vset.pattern.permute.xlu0 0
        %946 = vperm.xlu0 %945, %v942
        %v947 = vpop.permute.xlu0 %946
        %950 = vset.pattern.permute.xlu0 0
        %951 = vperm.xlu0 %950, %v943
        %v952 = vpop.permute.xlu0 %951
        %v955 = vsel %vm221, %v939, 0
        %v958 = vsel %vm221, %v940, 0
        %960 = vmatpush.msra.mxu0 0.0
        %961 = vmatpush.msra.mxu0 0.0
        %962 = vmatpush.msra.mxu0 0.0
        %963 = vmatpush.msra.mxu0 0.0
        %964 = vmatpush.msra.mxu0 0.0
        %965 = vmatpush.msra.mxu0 0.0
        %966 = vmatpush.msra.mxu0 0.0
        %967 = vmatpush.msra.mxu0 0.0
        %968 = vmatpush.msra.mxu0 0.0
        %969 = vmatpush.msra.mxu0 0.0
        %970 = vmatpush.msra.mxu0 0.0
        %971 = vmatpush.msra.mxu0 0.0
        %972 = vmatpush.msra.mxu0 0.0
        %973 = vmatpush.msra.mxu0 0.0
        %974 = vmatpush.msra.mxu0 %v934
        %975 = vmatpush.msra.mxu0 %v930
        %976 = vmatmul.f32.gmra.mxu0 %v955
        %v977 = vpop.f32.mrf.mxu0
        %v978 = vadd.f32 %v947, %v977
        %979 = vmatmul.f32.gmra.mxu0 %v958
        %v980 = vpop.f32.mrf.mxu0
        %v981 = vadd.f32 %v952, %v980
        %982 = vdwg.mxu0
        %983 = vmatpush.msra.mxu0 0.0
        %984 = vmatpush.msra.mxu0 0.0
        %985 = vmatpush.msra.mxu0 0.0
        %986 = vmatpush.msra.mxu0 0.0
        %987 = vmatpush.msra.mxu0 0.0
        %988 = vmatpush.msra.mxu0 0.0
        %989 = vmatpush.msra.mxu0 0.0
        %990 = vmatpush.msra.mxu0 0.0
        %991 = vmatpush.msra.mxu0 0.0
        %992 = vmatpush.msra.mxu0 0.0
        %993 = vmatpush.msra.mxu0 0.0
        %994 = vmatpush.msra.mxu0 0.0
        %995 = vmatpush.msra.mxu0 0.0
        %996 = vmatpush.msra.mxu0 0.0
        %997 = vmatpush.msra.mxu0 %v935
        %998 = vmatpush.msra.mxu0 %v931
        %999 = vmatmul.f32.gmra.mxu0 %v955
        %v1000 = vpop.f32.mrf.mxu0
        %v1001 = vadd.f32 %v947, %v1000
        %1002 = vmatmul.f32.gmra.mxu0 %v958
        %v1003 = vpop.f32.mrf.mxu0
        %v1004 = vadd.f32 %v952, %v1003
        %1005 = vdwg.mxu0
        %1006 = vmatpush.msra.mxu0 0.0
        %1007 = vmatpush.msra.mxu0 0.0
        %1008 = vmatpush.msra.mxu0 0.0
        %1009 = vmatpush.msra.mxu0 0.0
        %1010 = vmatpush.msra.mxu0 0.0
        %1011 = vmatpush.msra.mxu0 0.0
        %1012 = vmatpush.msra.mxu0 0.0
        %1013 = vmatpush.msra.mxu0 0.0
        %1014 = vmatpush.msra.mxu0 0.0
        %1015 = vmatpush.msra.mxu0 0.0
        %1016 = vmatpush.msra.mxu0 0.0
        %1017 = vmatpush.msra.mxu0 0.0
        %1018 = vmatpush.msra.mxu0 0.0
        %1019 = vmatpush.msra.mxu0 0.0
        %1020 = vmatpush.msra.mxu0 %v936
        %1021 = vmatpush.msra.mxu0 %v932
        %1022 = vmatmul.f32.gmra.mxu0 %v955
        %v1023 = vpop.f32.mrf.mxu0
        %v1024 = vadd.f32 %v947, %v1023
        %1025 = vmatmul.f32.gmra.mxu0 %v958
        %v1026 = vpop.f32.mrf.mxu0
        %v1027 = vadd.f32 %v952, %v1026
        %1028 = vdwg.mxu0
        %1029 = vmatpush.msra.mxu0 0.0
        %1030 = vmatpush.msra.mxu0 0.0
        %1031 = vmatpush.msra.mxu0 0.0
        %1032 = vmatpush.msra.mxu0 0.0
        %1033 = vmatpush.msra.mxu0 0.0
        %1034 = vmatpush.msra.mxu0 0.0
        %1035 = vmatpush.msra.mxu0 0.0
        %1036 = vmatpush.msra.mxu0 0.0
        %1037 = vmatpush.msra.mxu0 0.0
        %1038 = vmatpush.msra.mxu0 0.0
        %1039 = vmatpush.msra.mxu0 0.0
        %1040 = vmatpush.msra.mxu0 0.0
        %1041 = vmatpush.msra.mxu0 0.0
        %1042 = vmatpush.msra.mxu0 0.0
        %1043 = vmatpush.msra.mxu0 %v937
        %1044 = vmatpush.msra.mxu0 %v933
        %1045 = vmatmul.f32.gmra.mxu0 %v955
        %v1046 = vpop.f32.mrf.mxu0
        %v1047 = vadd.f32 %v947, %v1046
        %1048 = vmatmul.f32.gmra.mxu0 %v958
        %v1049 = vpop.f32.mrf.mxu0
        %v1050 = vadd.f32 %v952, %v1049
        %1051 = vdwg.mxu0
        %v1052 = vtanh.pop %v978
        %v1053 = vtanh.pop %v1001
        %v1054 = vtanh.pop %v1024
        %v1055 = vtanh.pop %v1047
        %v1056 = vtanh.pop %v981
        %v1057 = vtanh.pop %v1004
        %v1058 = vtanh.pop %v1027
        %v1059 = vtanh.pop %v1050
        %s1060 = scalar_lea.vmem %s1, 112
        %v1061 = vld [vmem:[%s1060] sm:$0xff]
        %v1062 = vld [vmem:[%s1060 + $0x8] sm:$0xff]
        %s1063 = scalar_lea.vmem %s2, 112
        %v1064 = vld [vmem:[%s1063] sm:$0xff]
        %v1065 = vld [vmem:[%s1063 + $0x8] sm:$0xff]
        %1067 = vset.pattern.permute.xlu0 0
        %1068 = vperm.xlu0 %1067, %v1064
        %v1069 = vpop.permute.xlu0 %1068
        %1072 = vset.pattern.permute.xlu0 0
        %1073 = vperm.xlu0 %1072, %v1065
        %v1074 = vpop.permute.xlu0 %1073
        %v1077 = vsel %vm221, %v1061, 0
        %v1080 = vsel %vm221, %v1062, 0
        %1082 = vmatpush.msra.mxu0 0.0
        %1083 = vmatpush.msra.mxu0 0.0
        %1084 = vmatpush.msra.mxu0 0.0
        %1085 = vmatpush.msra.mxu0 0.0
        %1086 = vmatpush.msra.mxu0 0.0
        %1087 = vmatpush.msra.mxu0 0.0
        %1088 = vmatpush.msra.mxu0 0.0
        %1089 = vmatpush.msra.mxu0 0.0
        %1090 = vmatpush.msra.mxu0 0.0
        %1091 = vmatpush.msra.mxu0 0.0
        %1092 = vmatpush.msra.mxu0 0.0
        %1093 = vmatpush.msra.mxu0 0.0
        %1094 = vmatpush.msra.mxu0 0.0
        %1095 = vmatpush.msra.mxu0 0.0
        %1096 = vmatpush.msra.mxu0 %v1056
        %1097 = vmatpush.msra.mxu0 %v1052
        %1098 = vmatmul.f32.gmra.mxu0 %v1077
        %v1099 = vpop.f32.mrf.mxu0
        %v1100 = vadd.f32 %v1069, %v1099
        %1101 = vmatmul.f32.gmra.mxu0 %v1080
        %v1102 = vpop.f32.mrf.mxu0
        %v1103 = vadd.f32 %v1074, %v1102
        %1104 = vdwg.mxu0
        %1105 = vmatpush.msra.mxu0 0.0
        %1106 = vmatpush.msra.mxu0 0.0
        %1107 = vmatpush.msra.mxu0 0.0
        %1108 = vmatpush.msra.mxu0 0.0
        %1109 = vmatpush.msra.mxu0 0.0
        %1110 = vmatpush.msra.mxu0 0.0
        %1111 = vmatpush.msra.mxu0 0.0
        %1112 = vmatpush.msra.mxu0 0.0
        %1113 = vmatpush.msra.mxu0 0.0
        %1114 = vmatpush.msra.mxu0 0.0
        %1115 = vmatpush.msra.mxu0 0.0
        %1116 = vmatpush.msra.mxu0 0.0
        %1117 = vmatpush.msra.mxu0 0.0
        %1118 = vmatpush.msra.mxu0 0.0
        %1119 = vmatpush.msra.mxu0 %v1057
        %1120 = vmatpush.msra.mxu0 %v1053
        %1121 = vmatmul.f32.gmra.mxu0 %v1077
        %v1122 = vpop.f32.mrf.mxu0
        %v1123 = vadd.f32 %v1069, %v1122
        %1124 = vmatmul.f32.gmra.mxu0 %v1080
        %v1125 = vpop.f32.mrf.mxu0
        %v1126 = vadd.f32 %v1074, %v1125
        %1127 = vdwg.mxu0
        %1128 = vmatpush.msra.mxu0 0.0
        %1129 = vmatpush.msra.mxu0 0.0
        %1130 = vmatpush.msra.mxu0 0.0
        %1131 = vmatpush.msra.mxu0 0.0
        %1132 = vmatpush.msra.mxu0 0.0
        %1133 = vmatpush.msra.mxu0 0.0
        %1134 = vmatpush.msra.mxu0 0.0
        %1135 = vmatpush.msra.mxu0 0.0
        %1136 = vmatpush.msra.mxu0 0.0
        %1137 = vmatpush.msra.mxu0 0.0
        %1138 = vmatpush.msra.mxu0 0.0
        %1139 = vmatpush.msra.mxu0 0.0
        %1140 = vmatpush.msra.mxu0 0.0
        %1141 = vmatpush.msra.mxu0 0.0
        %1142 = vmatpush.msra.mxu0 %v1058
        %1143 = vmatpush.msra.mxu0 %v1054
        %1144 = vmatmul.f32.gmra.mxu0 %v1077
        %v1145 = vpop.f32.mrf.mxu0
        %v1146 = vadd.f32 %v1069, %v1145
        %1147 = vmatmul.f32.gmra.mxu0 %v1080
        %v1148 = vpop.f32.mrf.mxu0
        %v1149 = vadd.f32 %v1074, %v1148
        %1150 = vdwg.mxu0
        %1151 = vmatpush.msra.mxu0 0.0
        %1152 = vmatpush.msra.mxu0 0.0
        %1153 = vmatpush.msra.mxu0 0.0
        %1154 = vmatpush.msra.mxu0 0.0
        %1155 = vmatpush.msra.mxu0 0.0
        %1156 = vmatpush.msra.mxu0 0.0
        %1157 = vmatpush.msra.mxu0 0.0
        %1158 = vmatpush.msra.mxu0 0.0
        %1159 = vmatpush.msra.mxu0 0.0
        %1160 = vmatpush.msra.mxu0 0.0
        %1161 = vmatpush.msra.mxu0 0.0
        %1162 = vmatpush.msra.mxu0 0.0
        %1163 = vmatpush.msra.mxu0 0.0
        %1164 = vmatpush.msra.mxu0 0.0
        %1165 = vmatpush.msra.mxu0 %v1059
        %1166 = vmatpush.msra.mxu0 %v1055
        %1167 = vmatmul.f32.gmra.mxu0 %v1077
        %v1168 = vpop.f32.mrf.mxu0
        %v1169 = vadd.f32 %v1069, %v1168
        %1170 = vmatmul.f32.gmra.mxu0 %v1080
        %v1171 = vpop.f32.mrf.mxu0
        %v1172 = vadd.f32 %v1074, %v1171
        %1173 = vdwg.mxu0
        %v1174 = vtanh.pop %v1100
        %v1175 = vtanh.pop %v1123
        %v1176 = vtanh.pop %v1146
        %v1177 = vtanh.pop %v1169
        %v1178 = vtanh.pop %v1103
        %v1179 = vtanh.pop %v1126
        %v1180 = vtanh.pop %v1149
        %v1181 = vtanh.pop %v1172
        %s1182 = scalar_lea.vmem %s1, 128
        %v1183 = vld [vmem:[%s1182] sm:$0xff]
        %v1184 = vld [vmem:[%s1182 + $0x8] sm:$0xff]
        %s1185 = scalar_lea.vmem %s2, 128
        %v1186 = vld [vmem:[%s1185] sm:$0xff]
        %v1187 = vld [vmem:[%s1185 + $0x8] sm:$0xff]
        %1189 = vset.pattern.permute.xlu0 0
        %1190 = vperm.xlu0 %1189, %v1186
        %v1191 = vpop.permute.xlu0 %1190
        %1194 = vset.pattern.permute.xlu0 0
        %1195 = vperm.xlu0 %1194, %v1187
        %v1196 = vpop.permute.xlu0 %1195
        %v1198 = vsel %vm221, %v1183, 0
        %v1201 = vsel %vm221, %v1184, 0
        %1203 = vmatpush.msra.mxu0 0.0
        %1204 = vmatpush.msra.mxu0 0.0
        %1205 = vmatpush.msra.mxu0 0.0
        %1206 = vmatpush.msra.mxu0 0.0
        %1207 = vmatpush.msra.mxu0 0.0
        %1208 = vmatpush.msra.mxu0 0.0
        %1209 = vmatpush.msra.mxu0 0.0
        %1210 = vmatpush.msra.mxu0 0.0
        %1211 = vmatpush.msra.mxu0 0.0
        %1212 = vmatpush.msra.mxu0 0.0
        %1213 = vmatpush.msra.mxu0 0.0
        %1214 = vmatpush.msra.mxu0 0.0
        %1215 = vmatpush.msra.mxu0 0.0
        %1216 = vmatpush.msra.mxu0 0.0
        %1217 = vmatpush.msra.mxu0 %v1178
        %1218 = vmatpush.msra.mxu0 %v1174
        %1219 = vmatmul.f32.gmra.mxu0 %v1198
        %v1220 = vpop.f32.mrf.mxu0
        %v1221 = vadd.f32 %v1191, %v1220
        %1222 = vmatmul.f32.gmra.mxu0 %v1201
        %v1223 = vpop.f32.mrf.mxu0
        %1224 = vdwg.mxu0
        %1225 = vmatpush.msra.mxu0 0.0
        %1226 = vmatpush.msra.mxu0 0.0
        %1227 = vmatpush.msra.mxu0 0.0
        %1228 = vmatpush.msra.mxu0 0.0
        %1229 = vmatpush.msra.mxu0 0.0
        %1230 = vmatpush.msra.mxu0 0.0
        %1231 = vmatpush.msra.mxu0 0.0
        %1232 = vmatpush.msra.mxu0 0.0
        %1233 = vmatpush.msra.mxu0 0.0
        %1234 = vmatpush.msra.mxu0 0.0
        %1235 = vmatpush.msra.mxu0 0.0
        %1236 = vmatpush.msra.mxu0 0.0
        %1237 = vmatpush.msra.mxu0 0.0
        %1238 = vmatpush.msra.mxu0 0.0
        %1239 = vmatpush.msra.mxu0 %v1179
        %1240 = vmatpush.msra.mxu0 %v1175
        %1241 = vmatmul.f32.gmra.mxu0 %v1198
        %v1242 = vpop.f32.mrf.mxu0
        %v1243 = vadd.f32 %v1191, %v1242
        %1244 = vmatmul.f32.gmra.mxu0 %v1201
        %v1245 = vpop.f32.mrf.mxu0
        %1246 = vdwg.mxu0
        %1247 = vmatpush.msra.mxu0 0.0
        %1248 = vmatpush.msra.mxu0 0.0
        %1249 = vmatpush.msra.mxu0 0.0
        %1250 = vmatpush.msra.mxu0 0.0
        %1251 = vmatpush.msra.mxu0 0.0
        %1252 = vmatpush.msra.mxu0 0.0
        %1253 = vmatpush.msra.mxu0 0.0
        %1254 = vmatpush.msra.mxu0 0.0
        %1255 = vmatpush.msra.mxu0 0.0
        %1256 = vmatpush.msra.mxu0 0.0
        %1257 = vmatpush.msra.mxu0 0.0
        %1258 = vmatpush.msra.mxu0 0.0
        %1259 = vmatpush.msra.mxu0 0.0
        %1260 = vmatpush.msra.mxu0 0.0
        %1261 = vmatpush.msra.mxu0 %v1180
        %1262 = vmatpush.msra.mxu0 %v1176
        %1263 = vmatmul.f32.gmra.mxu0 %v1198
        %v1264 = vpop.f32.mrf.mxu0
        %v1265 = vadd.f32 %v1191, %v1264
        %1266 = vmatmul.f32.gmra.mxu0 %v1201
        %v1267 = vpop.f32.mrf.mxu0
        %1268 = vdwg.mxu0
        %1269 = vmatpush.msra.mxu0 0.0
        %1270 = vmatpush.msra.mxu0 0.0
        %1271 = vmatpush.msra.mxu0 0.0
        %1272 = vmatpush.msra.mxu0 0.0
        %1273 = vmatpush.msra.mxu0 0.0
        %1274 = vmatpush.msra.mxu0 0.0
        %1275 = vmatpush.msra.mxu0 0.0
        %1276 = vmatpush.msra.mxu0 0.0
        %1277 = vmatpush.msra.mxu0 0.0
        %1278 = vmatpush.msra.mxu0 0.0
        %1279 = vmatpush.msra.mxu0 0.0
        %1280 = vmatpush.msra.mxu0 0.0
        %1281 = vmatpush.msra.mxu0 0.0
        %1282 = vmatpush.msra.mxu0 0.0
        %1283 = vmatpush.msra.mxu0 %v1181
        %1284 = vmatpush.msra.mxu0 %v1177
        %1285 = vmatmul.f32.gmra.mxu0 %v1198
        %v1286 = vpop.f32.mrf.mxu0
        %v1287 = vadd.f32 %v1191, %v1286
        %1288 = vmatmul.f32.gmra.mxu0 %v1201
        %v1289 = vpop.f32.mrf.mxu0
        %1290 = vdwg.mxu0
        %v1295 = vrot.slane %v1243, 7
        %v1296 = vrot.slane %v1265, 6
        %v1297 = vrot.slane %v1287, 5
        %vm1298 = vcmask 1040384
        %v1299 = vsel %vm1298, %v1221, %v1295
        %vm1300 = vcmask 1042434
        %v1301 = vsel %vm1300, %v1296, %v1297
        %v1302 = vsel %vm202, %v1299, %v1301
        %v1304 = vlaneseq
        %vm1305 = vcmp.ge.s32.totalorder %v1304, 0
        %vm1306 = vcmp.lt.s32.totalorder %v1304, 512
        %vm1307 = vmand %vm1305, %vm1306
        %1308 = vst.msk [vmem:[%s188] sm:$0xf] %vm1307, %v1302
        %s1309 = sand.u32 %s96, 1
        %s1310 = scalar_lea.sflag [#allocation4], %s1309
        %s1311 = sand.u32 %s96, 1
        %s1312 = smul.addr %s1311, 4
        %s1313 = scalar_lea.vmem [#allocation5], %s1312
        // Predicated region
        $region37: #{burgers_pinn_forward.1} parent=31 // pred_check
          %p1314 = pneg %p106
        $region38: #{burgers_pinn_forward.1} parent=31 // pred_check_branch
          %1316 = sbr.rel (%p1314) target = $region40
        $region39: #{burgers_pinn_forward.1} parent=31 // pred_region
          %s1317 = smul.u32 4, %s20
          %1319 = vsyncadd %s1310, 0
          %s1320 = scalar_lea.hbm %s3, %s1317
          %s1322 = sshll.u32 %s1313, 4
          %s1323 = int_to_ptr.vmem [resolvable:$true] %s1322
          %s1324 = sshll.u32 %s1320, 4
          %s1325 = int_to_ptr.hbm [resolvable:$true] %s1324
          %1327 = dma.vmem_to_hbm [thread:$0]  %s1323, 64, %s1325, %s1310
        $region40: #{burgers_pinn_forward.1} parent=31 // pred_fallthru
          _
      $region32: #{burgers_pinn_forward.1} parent=5 // pred_fallthru
        _
      %p1328 = scmp.le.s32.totalorder 2, %s15
      // Predicated region
      $region41: #{burgers_pinn_forward.1} parent=5 // pred_check
        %p1329 = pneg %p1328
      $region42: #{burgers_pinn_forward.1} parent=5 // pred_check_branch
        %1331 = sbr.rel (%p1329) target = $region44
      $region43: #{burgers_pinn_forward.1} parent=5 // pred_region
        %s1332 = ssub.s32 %s15, 2
        // Predicated region
        $region45: #{burgers_pinn_forward.1} parent=43 // pred_check
          %p1333 = pneg %p112
        $region46: #{burgers_pinn_forward.1} parent=43 // pred_check_branch
          %1335 = sbr.rel (%p1333) target = $region48
        $region47: #{burgers_pinn_forward.1} parent=43 // pred_region
          %s1336 = sand.u32 %s97, 1
          %s1337 = scalar_lea.sflag [#allocation4], %s1336
          %s1338 = sand.u32 %s97, 1
          %s1339 = smul.addr %s1338, 4
          %s1340 = scalar_lea.vmem [#allocation5], %s1339
          %1342 = dma.done %s1337, 64
        $region48: #{burgers_pinn_forward.1} parent=43 // pred_fallthru
          _
      $region44: #{burgers_pinn_forward.1} parent=5 // pred_fallthru
        _
    $region6: #{burgers_pinn_forward.1} parent=1 // loop_footer
      %s19 = sadd.s32 1, %s15
    $region7: #{burgers_pinn_forward.1} parent=1 // loop_footer_branch
      %14 = sbr.rel target = $region3
    $region8: #{burgers_pinn_forward.1} parent=1 // loop_exit
      _
    %1343 = vsyncpa [#allocation3], 1
    %s1344 = scalar_lea.sflag [#allocation3], 1
    %1345 = vsyncpa %s1344, 1
    %1346 = vsyncpa [#allocation4], 1
    %s1347 = scalar_lea.sflag [#allocation4], 1
    %1348 = vsyncpa %s1347, 1

</llo_original>
